<compile_context>
chip_gen: v6e
topology: v6e:2x2x1
jax: 0.10.0
libtpu: 0.0.40
codegen_flags: <defaults>
</compile_context>

<pallas_src>
import math
import functools

import jax
import jax.numpy as jnp
from jax.experimental import pallas as pl
from jax.experimental.pallas import tpu as pltpu


def _round_up(x, mult):
    return ((x + mult - 1) // mult) * mult


def _arc_margin_kernel(x_ref, w_ref, lbl_ref, rx_ref, rw_ref, o_ref, *,
                       s, cos_m, sin_m, th, mm, easy_margin, ls_eps,
                       out_features, block_n):
    j = pl.program_id(1)

    # (tb, F) @ (tn, F) contracted on the last dim of both -> (tb, tn) on the MXU,
    # no explicit transpose of the weight tile.
    raw = jax.lax.dot_general(
        x_ref[...], w_ref[...],
        dimension_numbers=(((1,), (1,)), ((), ())),
        preferred_element_type=jnp.float32)

    # Rescale by the precomputed reciprocal row norms instead of normalizing the
    # full F-length rows inside every grid step.
    cosine = raw * rx_ref[...] * rw_ref[...]              # (tb,1) and (1,tn) broadcast

    # Clamp: f32 rounding can push |cosine| a few ULPs past 1 -> NaN in sqrt.
    sine = jnp.sqrt(jnp.maximum(1.0 - cosine * cosine, 0.0))
    phi = cosine * cos_m - sine * sin_m
    if easy_margin:
        phi = jnp.where(cosine > 0.0, phi, cosine)
    else:
        phi = jnp.where(cosine > th, phi, cosine - mm)

    # Global column ids for this N-tile (scatter-free one-hot).
    col = jax.lax.broadcasted_iota(jnp.int32, cosine.shape, 1) + j * block_n
    is_target = col == lbl_ref[...]                        # (tb, tn) bool

    if ls_eps > 0.0:
        blend = (1.0 - ls_eps) * is_target.astype(jnp.float32) + (ls_eps / out_features)
        out = (cosine + blend * (phi - cosine)) * s
    else:
        out = jnp.where(is_target, phi, cosine) * s

    o_ref[...] = out.astype(o_ref.dtype)


def arc_margin_product(x, weight, label, *, s=30.0, m=0.5,
                       easy_margin=False, ls_eps=0.0,
                       block_b=None, block_n=None, compute_dtype=None):
    """Pallas implementation of ArcMarginProduct.forward.

    x:      (B, in_features)
    weight: (out_features, in_features)   (PyTorch layout)
    label:  (B,) integer class indices
    returns (B, out_features) float32 logits
    """
    B, F = x.shape
    N, Fw = weight.shape
    assert F == Fw, "in_features mismatch"

    # Reciprocal L2 row norms (F.normalize semantics: x / max(||x||, 1e-12)),
    # computed once in f32 regardless of the matmul compute dtype.
    x32 = x.astype(jnp.float32)
    w32 = weight.astype(jnp.float32)
    rx = 1.0 / jnp.maximum(jnp.sqrt(jnp.sum(x32 * x32, axis=1, keepdims=True)), 1e-12)
    rw = (1.0 / jnp.maximum(jnp.sqrt(jnp.sum(w32 * w32, axis=1)), 1e-12)).reshape(1, N)

    # Tile sizes: sublane-aligned B tiles, lane-dense N tiles (multiple of 128).
    if block_b is None:
        block_b = min(_round_up(B, 8), 256)
    if block_n is None:
        block_n = min(_round_up(N, 128), 2048)
    assert block_b % 8 == 0 and block_n % 128 == 0

    Bp = _round_up(B, block_b)
    Np = _round_up(N, block_n)

    x_p = x
    w_p = weight
    lbl_p = label.reshape(B, 1).astype(jnp.int32)
    rx_p, rw_p = rx, rw
    if Bp != B:
        x_p = jnp.pad(x_p, ((0, Bp - B), (0, 0)))
        lbl_p = jnp.pad(lbl_p, ((0, Bp - B), (0, 0)))
        rx_p = jnp.pad(rx_p, ((0, Bp - B), (0, 0)), constant_values=1.0)
    if Np != N:
        w_p = jnp.pad(w_p, ((0, Np - N), (0, 0)))
        rw_p = jnp.pad(rw_p, ((0, 0), (0, Np - N)), constant_values=1.0)

    # Optional bf16 operands (halves weight HBM traffic, native MXU rate).
    if compute_dtype is not None:
        x_p = x_p.astype(compute_dtype)
        w_p = w_p.astype(compute_dtype)

    grid = (Bp // block_b, Np // block_n)

    kernel = functools.partial(
        _arc_margin_kernel,
        s=float(s),
        cos_m=math.cos(m),
        sin_m=math.sin(m),
        th=math.cos(math.pi - m),
        mm=math.sin(math.pi - m) * m,
        easy_margin=bool(easy_margin),
        ls_eps=float(ls_eps),
        out_features=N,           # original (unpadded) class count for ls_eps term
        block_n=block_n,
    )

    cost = pl.CostEstimate(
        flops=2 * Bp * Np * F,
        transcendentals=Bp * Np,
        bytes_accessed=(x_p.size * x_p.dtype.itemsize
                        + grid[0] * w_p.size * w_p.dtype.itemsize   # W re-streamed per B-tile
                        + Bp * Np * 4),
    )

    out_p = pl.pallas_call(
        kernel,
        out_shape=jax.ShapeDtypeStruct((Bp, Np), jnp.float32),
        grid=grid,
        in_specs=[
            pl.BlockSpec((block_b, F), lambda i, j: (i, 0)),      # x tile
            pl.BlockSpec((block_n, F), lambda i, j: (j, 0)),      # weight tile
            pl.BlockSpec((block_b, 1), lambda i, j: (i, 0)),      # labels
            pl.BlockSpec((block_b, 1), lambda i, j: (i, 0)),      # 1/||x||
            pl.BlockSpec((1, block_n), lambda i, j: (0, j)),      # 1/||w||
        ],
        out_specs=pl.BlockSpec((block_b, block_n), lambda i, j: (i, j)),
        compiler_params=pltpu.CompilerParams(
            dimension_semantics=("parallel", "parallel"),
            vmem_limit_bytes=40 * 1024 * 1024,   # safe on v5e/v6e/v7x, room for dbl-buffer
        ),
        cost_estimate=cost,
    )(x_p, w_p, lbl_p, rx_p, rw_p)

    return out_p[:B, :N]


def _reference(x, weight, label, *, s=30.0, m=0.5, easy_margin=False, ls_eps=0.0):
    xn = x / jnp.maximum(jnp.linalg.norm(x, axis=1, keepdims=True), 1e-12)
    wn = weight / jnp.maximum(jnp.linalg.norm(weight, axis=1, keepdims=True), 1e-12)
    cosine = xn @ wn.T
    sine = jnp.sqrt(jnp.maximum(1.0 - cosine ** 2, 0.0))
    phi = cosine * math.cos(m) - sine * math.sin(m)
    if easy_margin:
        phi = jnp.where(cosine > 0, phi, cosine)
    else:
        phi = jnp.where(cosine > math.cos(math.pi - m),
                        phi, cosine - math.sin(math.pi - m) * m)
    one_hot = jax.nn.one_hot(label, weight.shape[0], dtype=jnp.float32)
    if ls_eps > 0:
        one_hot = (1 - ls_eps) * one_hot + ls_eps / weight.shape[0]
    return (one_hot * phi + (1.0 - one_hot) * cosine) * s


if __name__ == "__main__":
    key = jax.random.PRNGKey(0)
    k_x, k_w, k_l = jax.random.split(key, 3)

    # Small shapes chosen to exercise B padding (10 -> 16), N padding (200 -> 256)
    # and a multi-tile grid (2 x 2) including the N-tile column-index offset.
    B, in_features, out_features = 10, 64, 200

    x = jax.random.normal(k_x, (B, in_features), dtype=jnp.float32)
    # TODO(synk): xavier_uniform_ weight init is plain JAX glue, not a kernel.
    bound = math.sqrt(6.0 / (in_features + out_features))
    weight = jax.random.uniform(k_w, (out_features, in_features),
                                dtype=jnp.float32, minval=-bound, maxval=bound)
    label = jax.random.randint(k_l, (B,), 0, out_features, dtype=jnp.int32)

    out = arc_margin_product(x, weight, label, s=30.0, m=0.5,
                             easy_margin=False, ls_eps=0.0,
                             block_b=8, block_n=128)
    out = jax.block_until_ready(out)
    ref = _reference(x, weight, label, s=30.0, m=0.5, easy_margin=False, ls_eps=0.0)
    assert out.shape == (B, out_features)
    assert jnp.allclose(out, ref, atol=1e-4, rtol=1e-4), \
        float(jnp.max(jnp.abs(out - ref)))

    # Second config: easy_margin + label smoothing branch.
    out2 = arc_margin_product(x, weight, label, s=30.0, m=0.5,
                              easy_margin=True, ls_eps=0.1,
                              block_b=8, block_n=128)
    out2 = jax.block_until_ready(out2)
    ref2 = _reference(x, weight, label, s=30.0, m=0.5, easy_margin=True, ls_eps=0.1)
    assert jnp.allclose(out2, ref2, atol=1e-4, rtol=1e-4), \
        float(jnp.max(jnp.abs(out2 - ref2)))

    print("KERNEL_OK")
</pallas_src>

<mosaic_0001>
module attributes {stable_mosaic.version = 11 : i64} {
  func.func @_arc_margin_kernel(%arg0: i32, %arg1: i32, %arg2: memref<8x64xf32, #tpu.memory_space<vmem>>, %arg3: memref<128x64xf32, #tpu.memory_space<vmem>>, %arg4: memref<8x1xi32, #tpu.memory_space<vmem>>, %arg5: memref<8x1xf32, #tpu.memory_space<vmem>>, %arg6: memref<1x128xf32, #tpu.memory_space<vmem>>, %arg7: memref<8x128xf32, #tpu.memory_space<vmem>>) attributes {dimension_semantics = [#tpu.dimension_semantics<parallel>, #tpu.dimension_semantics<parallel>], iteration_bounds = array<i64: 2, 2>, scalar_prefetch = 0 : i64, scratch_operands = 0 : i64, tpu.core_type = #tpu.core_type<tc>, window_params = [{transform_indices = @transform_0, window_bounds = array<i64: 8, 64>}, {transform_indices = @transform_1, window_bounds = array<i64: 128, 64>}, {transform_indices = @transform_2, window_bounds = array<i64: 8, 1>}, {transform_indices = @transform_3, window_bounds = array<i64: 8, 1>}, {transform_indices = @transform_4, window_bounds = array<i64: 1, 128>}, {transform_indices = @transform_5, window_bounds = array<i64: 8, 128>}]} {
    %c0 = arith.constant 0 : index
    %c0_0 = arith.constant 0 : index
    %0 = vector.load %arg2[%c0, %c0_0] : memref<8x64xf32, #tpu.memory_space<vmem>>, vector<8x64xf32>
    %c0_1 = arith.constant 0 : index
    %c0_2 = arith.constant 0 : index
    %1 = vector.load %arg3[%c0_1, %c0_2] : memref<128x64xf32, #tpu.memory_space<vmem>>, vector<128x64xf32>
    %cst = arith.constant dense<0.000000e+00> : vector<8x128xf32>
    %2 = tpu.matmul %0, %1, %cst {dimension_numbers = #tpu.dot_dimension_numbers<[1], [1], [0], [0], [0, 0, 1, 0], [], []>} : vector<8x64xf32>, vector<128x64xf32>, vector<8x128xf32> -> vector<8x128xf32>
    %c0_3 = arith.constant 0 : index
    %c0_4 = arith.constant 0 : index
    %3 = vector.load %arg5[%c0_3, %c0_4] : memref<8x1xf32, #tpu.memory_space<vmem>>, vector<8x1xf32>
    %4 = vector.broadcast %3 : vector<8x1xf32> to vector<8x128xf32>
    %5 = arith.mulf %2, %4 : vector<8x128xf32>
    %c0_5 = arith.constant 0 : index
    %c0_6 = arith.constant 0 : index
    %6 = vector.load %arg6[%c0_5, %c0_6] : memref<1x128xf32, #tpu.memory_space<vmem>>, vector<1x128xf32>
    %7 = vector.broadcast %6 : vector<1x128xf32> to vector<8x128xf32>
    %8 = arith.mulf %5, %7 : vector<8x128xf32>
    %9 = arith.mulf %8, %8 : vector<8x128xf32>
    %cst_7 = arith.constant 1.000000e+00 : f32
    %10 = vector.broadcast %cst_7 : f32 to vector<8x128xf32>
    %11 = arith.subf %10, %9 : vector<8x128xf32>
    %cst_8 = arith.constant 0.000000e+00 : f32
    %12 = vector.broadcast %cst_8 : f32 to vector<8x128xf32>
    %13 = arith.maximumf %11, %12 : vector<8x128xf32>
    %14 = math.sqrt %13 : vector<8x128xf32>
    %cst_9 = arith.constant 0.87758255 : f32
    %15 = vector.broadcast %cst_9 : f32 to vector<8x128xf32>
    %16 = arith.mulf %8, %15 : vector<8x128xf32>
    %cst_10 = arith.constant 0.47942555 : f32
    %17 = vector.broadcast %cst_10 : f32 to vector<8x128xf32>
    %18 = arith.mulf %14, %17 : vector<8x128xf32>
    %19 = arith.subf %16, %18 : vector<8x128xf32>
    %cst_11 = arith.constant -0.87758255 : f32
    %20 = vector.broadcast %cst_11 : f32 to vector<8x128xf32>
    %21 = arith.cmpf ogt, %8, %20 : vector<8x128xf32>
    %cst_12 = arith.constant 0.239712775 : f32
    %22 = vector.broadcast %cst_12 : f32 to vector<8x128xf32>
    %23 = arith.subf %8, %22 : vector<8x128xf32>
    %24 = arith.select %21, %19, %23 : vector<8x128xi1>, vector<8x128xf32>
    %25 = tpu.iota {dimensions = array<i32: 1>} : vector<8x128xi32>
    %c128_i32 = arith.constant 128 : i32
    %26 = arith.muli %arg1, %c128_i32 : i32
    %27 = vector.broadcast %26 : i32 to vector<8x128xi32>
    %28 = arith.addi %25, %27 : vector<8x128xi32>
    %c0_13 = arith.constant 0 : index
    %c0_14 = arith.constant 0 : index
    %29 = vector.load %arg4[%c0_13, %c0_14] : memref<8x1xi32, #tpu.memory_space<vmem>>, vector<8x1xi32>
    %30 = vector.broadcast %29 : vector<8x1xi32> to vector<8x128xi32>
    %31 = arith.cmpi eq, %28, %30 : vector<8x128xi32>
    %32 = arith.select %31, %24, %8 : vector<8x128xi1>, vector<8x128xf32>
    %cst_15 = arith.constant 3.000000e+01 : f32
    %33 = vector.broadcast %cst_15 : f32 to vector<8x128xf32>
    %34 = arith.mulf %32, %33 : vector<8x128xf32>
    %c0_16 = arith.constant 0 : index
    %c0_17 = arith.constant 0 : index
    %35 = vector.load %arg7[%c0_16, %c0_17] : memref<8x128xf32, #tpu.memory_space<vmem>>, vector<8x128xf32>
    tpu.vector_store %arg7[%c0_16, %c0_17], %34 {strides = array<i32>} : memref<8x128xf32, #tpu.memory_space<vmem>>, vector<8x128xf32>,
    return
  }
  func.func @transform_0(%arg0: i32, %arg1: i32) -> (i32, i32) {
    %c0_i32 = arith.constant 0 : i32
    %c0_i32_0 = arith.constant 0 : i32
    return %arg0, %c0_i32 : i32, i32
  }
  func.func @transform_1(%arg0: i32, %arg1: i32) -> (i32, i32) {
    %c0_i32 = arith.constant 0 : i32
    %c0_i32_0 = arith.constant 0 : i32
    return %arg1, %c0_i32 : i32, i32
  }
  func.func @transform_2(%arg0: i32, %arg1: i32) -> (i32, i32) {
    %c0_i32 = arith.constant 0 : i32
    %c0_i32_0 = arith.constant 0 : i32
    return %arg0, %c0_i32 : i32, i32
  }
  func.func @transform_3(%arg0: i32, %arg1: i32) -> (i32, i32) {
    %c0_i32 = arith.constant 0 : i32
    %c0_i32_0 = arith.constant 0 : i32
    return %arg0, %c0_i32 : i32, i32
  }
  func.func @transform_4(%arg0: i32, %arg1: i32) -> (i32, i32) {
    %c0_i32 = arith.constant 0 : i32
    %c0_i32_0 = arith.constant 0 : i32
    return %c0_i32, %arg1 : i32, i32
  }
  func.func @transform_5(%arg0: i32, %arg1: i32) -> (i32, i32) {
    %c0_i32 = arith.constant 0 : i32
    return %arg0, %arg1 : i32, i32
  }
}

</mosaic_0001>

<llo_original>
// kernel: tpu_custom_call.1
$region0: #{tpu_custom_call.1}
  #allocation0 [shape = 'u32[]', space=smem, size = 0x4, offset = 0x4, fixed_abs, tag = 'smem constant byte address 0x4 - core index']
  #allocation1 [shape = 'u32[144,128]{1,0:T(1,128)}', space=vmem, size = 0x12000, scoped, tag = 'internal scratch']
  %s0 = inlined_call_operand.vmem [shape: f32[16,64], index: 0, kind: input, shape index: {}]
  %s1 = inlined_call_operand.vmem [shape: f32[256,64], index: 1, kind: input, shape index: {}]
  %s2 = inlined_call_operand.vmem [shape: s32[16,1], index: 2, kind: input, shape index: {}]
  %s3 = inlined_call_operand.vmem [shape: f32[16,1], index: 3, kind: input, shape index: {}]
  %s4 = inlined_call_operand.vmem [shape: f32[1,256], index: 4, kind: input, shape index: {}]
  %s5 = inlined_call_operand.hbm [shape: f32[16,256], index: 5, kind: output, shape index: {}]
  %s6 = sld [smem:[#allocation0]]
  $region53: #{tpu_custom_call.1} parent=0
    _
  %s8 = ssub.s32 1, %s6
  %s9 = scalar_select 0, %s8, %s6
  $region1: #{tpu_custom_call.1} parent=0
    #allocation2 [shape = 'u8[8192]{0}', space=vmem, size = 0x2000, scoped, tag = 'output window, operand 0']
    #allocation3 [shape = 's32[2]{0}', space=sflag, size = 0x8, scoped, tag = 'scoped memory for tpu_custom_call.1']
    %10 = vsyncpa [#allocation3], 0
    %s11 = scalar_lea.sflag [#allocation3], 1
    %12 = vsyncpa %s11, 0
    loop: start=0, step=1, limit=6
    $region2: #{tpu_custom_call.1} parent=1 // loop_pre_header
      _
    $region3: #{tpu_custom_call.1} parent=1 // loop_header
      %s14 = sphi 0, %s18
      %p15 = scmp.ge.s32.totalorder %s14, 6
      %s21 = sphi 0, %s33
      %s22 = sphi 0, %s29
      %s23 = sphi 0, %s21
      %s24 = sphi 0, %s22
      %s25 = sphi 0, %s23
      %s26 = sphi 0, %s24
      %s36 = sphi 0, %s38
      %s39 = sphi 0, %s36
      %s40 = sphi 0, %s39
      %s56 = sphi 0, %s40
      %s62 = sphi 0, %s64
      %s65 = sphi 0, %s62
      %s66 = sphi 0, %s65
      %s82 = sphi 0, %s66
      %s88 = sphi 0, %s90
      %s91 = sphi 0, %s88
      %s92 = sphi 0, %s91
      %s108 = sphi 0, %s92
      %s114 = sphi 0, %s116
      %s117 = sphi 0, %s114
      %s118 = sphi 0, %s117
      %s134 = sphi 0, %s118
      %s140 = sphi 0, %s142
      %s143 = sphi 0, %s140
      %s144 = sphi 0, %s143
      %s160 = sphi 0, %s144
      %s168 = sphi 0, %s170
      %s171 = sphi 0, %s168
      %s172 = sphi 0, %s171
      %s188 = sphi 0, %s172
    $region4: #{tpu_custom_call.1} parent=1 // loop_header_branch
      %17 = sbr.rel (%p15) target = $region8
    $region5: #{tpu_custom_call.1} parent=1 // loop_body
      %s19 = ssub.s32 %s14, 1
      %s20 = ssub.s32 %s14, 2
      %s27 = sadd.s32 1, %s22
      %p28 = scmp.ge.s32.totalorder %s27, 2
      %s29 = scalar_select %p28, 0, %s27
      %s30 = sadd.s32 1, %s21
      %s31 = scalar_select %p28, %s30, %s21
      %p32 = scmp.ge.s32.totalorder %s31, 2
      %s33 = scalar_select %p32, 0, %s31
      %s34 = ssub.s32 %s21, %s33
      %p35 = scmp.eq.s32.totalorder %s34, 0
      %s37 = sadd.s32 %s36, 1
      %s38 = scalar_select %p35, %s36, %s37
      %p41 = pneg %p35
      %p42 = scmp.eq.s32.totalorder %s14, 3
      %p43 = por %p41, %p42
      %p44 = scmp.ne.s32.totalorder %s36, %s39
      %p45 = scmp.eq.s32.totalorder %s14, 0
      %p46 = por %p44, %p45
      %p47 = scmp.ne.s32.totalorder %s36, %s39
      %p48 = scmp.eq.s32.totalorder %s19, 3
      %p49 = por %p47, %p48
      %p50 = scmp.ne.s32.totalorder %s39, %s40
      %p51 = scmp.eq.s32.totalorder %s19, 0
      %p52 = por %p50, %p51
      %p53 = scmp.ne.s32.totalorder %s39, %s40
      %p54 = scmp.eq.s32.totalorder %s20, 3
      %p55 = por %p53, %p54
      %p57 = scmp.ne.s32.totalorder %s40, %s56
      %p58 = scmp.eq.s32.totalorder %s20, 0
      %p59 = por %p57, %p58
      %s60 = ssub.s32 %s22, %s29
      %p61 = scmp.eq.s32.totalorder %s60, 0
      %s63 = sadd.s32 %s62, 1
      %s64 = scalar_select %p61, %s62, %s63
      %p67 = pneg %p61
      %p68 = scmp.eq.s32.totalorder %s14, 3
      %p69 = por %p67, %p68
      %p70 = scmp.ne.s32.totalorder %s62, %s65
      %p71 = scmp.eq.s32.totalorder %s14, 0
      %p72 = por %p70, %p71
      %p73 = scmp.ne.s32.totalorder %s62, %s65
      %p74 = scmp.eq.s32.totalorder %s19, 3
      %p75 = por %p73, %p74
      %p76 = scmp.ne.s32.totalorder %s65, %s66
      %p77 = scmp.eq.s32.totalorder %s19, 0
      %p78 = por %p76, %p77
      %p79 = scmp.ne.s32.totalorder %s65, %s66
      %p80 = scmp.eq.s32.totalorder %s20, 3
      %p81 = por %p79, %p80
      %p83 = scmp.ne.s32.totalorder %s66, %s82
      %p84 = scmp.eq.s32.totalorder %s20, 0
      %p85 = por %p83, %p84
      %s86 = ssub.s32 %s21, %s33
      %p87 = scmp.eq.s32.totalorder %s86, 0
      %s89 = sadd.s32 %s88, 1
      %s90 = scalar_select %p87, %s88, %s89
      %p93 = pneg %p87
      %p94 = scmp.eq.s32.totalorder %s14, 3
      %p95 = por %p93, %p94
      %p96 = scmp.ne.s32.totalorder %s88, %s91
      %p97 = scmp.eq.s32.totalorder %s14, 0
      %p98 = por %p96, %p97
      %p99 = scmp.ne.s32.totalorder %s88, %s91
      %p100 = scmp.eq.s32.totalorder %s19, 3
      %p101 = por %p99, %p100
      %p102 = scmp.ne.s32.totalorder %s91, %s92
      %p103 = scmp.eq.s32.totalorder %s19, 0
      %p104 = por %p102, %p103
      %p105 = scmp.ne.s32.totalorder %s91, %s92
      %p106 = scmp.eq.s32.totalorder %s20, 3
      %p107 = por %p105, %p106
      %p109 = scmp.ne.s32.totalorder %s92, %s108
      %p110 = scmp.eq.s32.totalorder %s20, 0
      %p111 = por %p109, %p110
      %s112 = ssub.s32 %s21, %s33
      %p113 = scmp.eq.s32.totalorder %s112, 0
      %s115 = sadd.s32 %s114, 1
      %s116 = scalar_select %p113, %s114, %s115
      %p119 = pneg %p113
      %p120 = scmp.eq.s32.totalorder %s14, 3
      %p121 = por %p119, %p120
      %p122 = scmp.ne.s32.totalorder %s114, %s117
      %p123 = scmp.eq.s32.totalorder %s14, 0
      %p124 = por %p122, %p123
      %p125 = scmp.ne.s32.totalorder %s114, %s117
      %p126 = scmp.eq.s32.totalorder %s19, 3
      %p127 = por %p125, %p126
      %p128 = scmp.ne.s32.totalorder %s117, %s118
      %p129 = scmp.eq.s32.totalorder %s19, 0
      %p130 = por %p128, %p129
      %p131 = scmp.ne.s32.totalorder %s117, %s118
      %p132 = scmp.eq.s32.totalorder %s20, 3
      %p133 = por %p131, %p132
      %p135 = scmp.ne.s32.totalorder %s118, %s134
      %p136 = scmp.eq.s32.totalorder %s20, 0
      %p137 = por %p135, %p136
      %s138 = ssub.s32 %s22, %s29
      %p139 = scmp.eq.s32.totalorder %s138, 0
      %s141 = sadd.s32 %s140, 1
      %s142 = scalar_select %p139, %s140, %s141
      %p145 = pneg %p139
      %p146 = scmp.eq.s32.totalorder %s14, 3
      %p147 = por %p145, %p146
      %p148 = scmp.ne.s32.totalorder %s140, %s143
      %p149 = scmp.eq.s32.totalorder %s14, 0
      %p150 = por %p148, %p149
      %p151 = scmp.ne.s32.totalorder %s140, %s143
      %p152 = scmp.eq.s32.totalorder %s19, 3
      %p153 = por %p151, %p152
      %p154 = scmp.ne.s32.totalorder %s143, %s144
      %p155 = scmp.eq.s32.totalorder %s19, 0
      %p156 = por %p154, %p155
      %p157 = scmp.ne.s32.totalorder %s143, %s144
      %p158 = scmp.eq.s32.totalorder %s20, 3
      %p159 = por %p157, %p158
      %p161 = scmp.ne.s32.totalorder %s144, %s160
      %p162 = scmp.eq.s32.totalorder %s20, 0
      %p163 = por %p161, %p162
      %s164 = ssub.s32 %s21, %s33
      %s165 = ssub.s32 %s22, %s29
      %s166 = sor.u32 %s164, %s165
      %p167 = scmp.eq.s32.totalorder %s166, 0
      %s169 = sadd.s32 %s168, 1
      %s170 = scalar_select %p167, %s168, %s169
      %p173 = pneg %p167
      %p174 = scmp.eq.s32.totalorder %s14, 3
      %p175 = por %p173, %p174
      %p176 = scmp.ne.s32.totalorder %s168, %s171
      %p177 = scmp.eq.s32.totalorder %s14, 0
      %p178 = por %p176, %p177
      %p179 = scmp.ne.s32.totalorder %s168, %s171
      %p180 = scmp.eq.s32.totalorder %s19, 3
      %p181 = por %p179, %p180
      %p182 = scmp.ne.s32.totalorder %s171, %s172
      %p183 = scmp.eq.s32.totalorder %s19, 0
      %p184 = por %p182, %p183
      %p185 = scmp.ne.s32.totalorder %s171, %s172
      %p186 = scmp.eq.s32.totalorder %s20, 3
      %p187 = por %p185, %p186
      %p189 = scmp.ne.s32.totalorder %s172, %s188
      %p190 = scmp.eq.s32.totalorder %s20, 0
      %p191 = por %p189, %p190
      %p192 = scmp.le.s32.totalorder 1, %s14
      %p193 = scmp.lt.s32.totalorder %s14, 5
      %p194 = pnand %p192, %p193
      %p195 = pneg %p194
      // Predicated region
      $region9: #{tpu_custom_call.1} parent=5 // pred_check
        _
      $region10: #{tpu_custom_call.1} parent=5 // pred_check_branch
        %197 = sbr.rel (%p194) target = $region12
      $region11: #{tpu_custom_call.1} parent=5 // pred_region
        %s198 = ssub.s32 %s14, 1
      $region12: #{tpu_custom_call.1} parent=5 // pred_fallthru
        _
      %p199 = scmp.lt.s32.totalorder %s14, 4
      // Predicated region
      $region13: #{tpu_custom_call.1} parent=5 // pred_check
        %p200 = pneg %p199
      $region14: #{tpu_custom_call.1} parent=5 // pred_check_branch
        %202 = sbr.rel (%p200) target = $region16
      $region15: #{tpu_custom_call.1} parent=5 // pred_region
        // Predicated region
        $region17: #{tpu_custom_call.1} parent=15 // pred_check
          %p203 = pneg %p46
        $region18: #{tpu_custom_call.1} parent=15 // pred_check_branch
          %205 = sbr.rel (%p203) target = $region20
        $region19: #{tpu_custom_call.1} parent=15 // pred_region
          %p206 = scmp.lt.s32.totalorder %s21, 1
          %s207 = scalar_select %p206, %s21, 1
          %s208 = smul.addr %s207, 8
          %s209 = scalar_lea.vmem %s0, %s208
        $region20: #{tpu_custom_call.1} parent=15 // pred_fallthru
          _
        // Predicated region
        $region21: #{tpu_custom_call.1} parent=15 // pred_check
          %p210 = pneg %p72
        $region22: #{tpu_custom_call.1} parent=15 // pred_check_branch
          %212 = sbr.rel (%p210) target = $region24
        $region23: #{tpu_custom_call.1} parent=15 // pred_region
          %s213 = smul.u32 16, %s22
          %p214 = scmp.lt.s32.totalorder %s213, 31
          %s215 = scalar_select %p214, %s213, 31
          %s216 = smul.addr %s215, 8
          %s217 = scalar_lea.vmem %s1, %s216
          %s218 = smul.u32 16, %s22
        $region24: #{tpu_custom_call.1} parent=15 // pred_fallthru
          _
        // Predicated region
        $region25: #{tpu_custom_call.1} parent=15 // pred_check
          %p219 = pneg %p98
        $region26: #{tpu_custom_call.1} parent=15 // pred_check_branch
          %221 = sbr.rel (%p219) target = $region28
        $region27: #{tpu_custom_call.1} parent=15 // pred_region
          %p222 = scmp.lt.s32.totalorder %s21, 1
          %s223 = scalar_select %p222, %s21, 1
          %s224 = smul.addr %s223, 8
          %s225 = scalar_lea.vmem %s2, %s224
        $region28: #{tpu_custom_call.1} parent=15 // pred_fallthru
          _
        // Predicated region
        $region29: #{tpu_custom_call.1} parent=15 // pred_check
          %p226 = pneg %p124
        $region30: #{tpu_custom_call.1} parent=15 // pred_check_branch
          %228 = sbr.rel (%p226) target = $region32
        $region31: #{tpu_custom_call.1} parent=15 // pred_region
          %p229 = scmp.lt.s32.totalorder %s21, 1
          %s230 = scalar_select %p229, %s21, 1
          %s231 = smul.addr %s230, 8
          %s232 = scalar_lea.vmem %s3, %s231
        $region32: #{tpu_custom_call.1} parent=15 // pred_fallthru
          _
        // Predicated region
        $region33: #{tpu_custom_call.1} parent=15 // pred_check
          %p233 = pneg %p150
        $region34: #{tpu_custom_call.1} parent=15 // pred_check_branch
          %235 = sbr.rel (%p233) target = $region36
        $region35: #{tpu_custom_call.1} parent=15 // pred_region
          %p236 = scmp.lt.s32.totalorder %s22, 1
          %s237 = scalar_select %p236, %s22, 1
          %s238 = scalar_lea.vmem %s4, %s237
        $region36: #{tpu_custom_call.1} parent=15 // pred_fallthru
          _
      $region16: #{tpu_custom_call.1} parent=5 // pred_fallthru
        _
      %p239 = scmp.le.s32.totalorder 1, %s14
      %p240 = scmp.lt.s32.totalorder %s14, 5
      %p241 = pnand %p239, %p240
      %p242 = pneg %p241
      // Predicated region
      $region37: #{tpu_custom_call.1} parent=5 // pred_check
        _
      $region38: #{tpu_custom_call.1} parent=5 // pred_check_branch
        %244 = sbr.rel (%p241) target = $region40
      $region39: #{tpu_custom_call.1} parent=5 // pred_region
        %s245 = ssub.s32 %s14, 1
        %p246 = scmp.lt.s32.totalorder %s23, 1
        %s247 = scalar_select %p246, %s23, 1
        %s248 = smul.addr %s247, 8
        %s249 = scalar_lea.vmem %s0, %s248
        %p250 = pneg %p52
        %p251 = pneg %p49
        %s252 = smul.u32 16, %s24
        %p253 = scmp.lt.s32.totalorder %s252, 31
        %s254 = scalar_select %p253, %s252, 31
        %s255 = smul.addr %s254, 8
        %s256 = scalar_lea.vmem %s1, %s255
        %p257 = pneg %p78
        %p258 = pneg %p75
        %p259 = scmp.lt.s32.totalorder %s23, 1
        %s260 = scalar_select %p259, %s23, 1
        %s261 = smul.addr %s260, 8
        %s262 = scalar_lea.vmem %s2, %s261
        %p263 = pneg %p104
        %p264 = pneg %p101
        %p265 = scmp.lt.s32.totalorder %s23, 1
        %s266 = scalar_select %p265, %s23, 1
        %s267 = smul.addr %s266, 8
        %s268 = scalar_lea.vmem %s3, %s267
        %p269 = pneg %p130
        %p270 = pneg %p127
        %p271 = scmp.lt.s32.totalorder %s24, 1
        %s272 = scalar_select %p271, %s24, 1
        %s273 = scalar_lea.vmem %s4, %s272
        %p274 = pneg %p156
        %p275 = pneg %p153
        %p276 = pneg %p184
        %p277 = pneg %p181
        %s278 = sand.u32 %s171, 1
        %s279 = scalar_lea.sflag [#allocation3], %s278
        %s280 = sand.u32 %s171, 1
        %s281 = smul.addr %s280, 8
        %s282 = scalar_lea.vmem [#allocation2], %s281
        %p283 = scmp.lt.s32.totalorder %s23, 1
        %s284 = scalar_select %p283, %s23, 1
        %s285 = smul.addr %s284, 8
        %s286 = scalar_lea.vmem %s0, %s285
        %s287 = smul.u32 16, %s24
        %p288 = scmp.lt.s32.totalorder %s287, 31
        %s289 = scalar_select %p288, %s287, 31
        %s290 = smul.addr %s289, 8
        %s291 = scalar_lea.vmem %s1, %s290
        %s292 = smul.u32 16, %s24
        %p293 = scmp.lt.s32.totalorder %s23, 1
        %s294 = scalar_select %p293, %s23, 1
        %s295 = smul.addr %s294, 8
        %s296 = scalar_lea.vmem %s2, %s295
        %p297 = scmp.lt.s32.totalorder %s23, 1
        %s298 = scalar_select %p297, %s23, 1
        %s299 = smul.addr %s298, 8
        %s300 = scalar_lea.vmem %s3, %s299
        %p301 = scmp.lt.s32.totalorder %s24, 1
        %s302 = scalar_select %p301, %s24, 1
        %s303 = scalar_lea.vmem %s4, %s302
        %v304 = vld [vmem:[%s286] sm:$0xff]
        %v305 = vld [vmem:[%s291] sm:$0xff]
        %v306 = vld [vmem:[%s291 + $0x8] sm:$0xff]
        %v307 = vld [vmem:[%s291 + $0x10] sm:$0xff]
        %v308 = vld [vmem:[%s291 + $0x18] sm:$0xff]
        %v309 = vld [vmem:[%s291 + $0x20] sm:$0xff]
        %v310 = vld [vmem:[%s291 + $0x28] sm:$0xff]
        %v311 = vld [vmem:[%s291 + $0x30] sm:$0xff]
        %v312 = vld [vmem:[%s291 + $0x38] sm:$0xff]
        %v313 = vld [vmem:[%s291 + $0x40] sm:$0xff]
        %v314 = vld [vmem:[%s291 + $0x48] sm:$0xff]
        %v315 = vld [vmem:[%s291 + $0x50] sm:$0xff]
        %v316 = vld [vmem:[%s291 + $0x58] sm:$0xff]
        %v317 = vld [vmem:[%s291 + $0x60] sm:$0xff]
        %v318 = vld [vmem:[%s291 + $0x68] sm:$0xff]
        %v319 = vld [vmem:[%s291 + $0x70] sm:$0xff]
        %v320 = vld [vmem:[%s291 + $0x78] sm:$0xff]
        %vm321 = vcmask 523264
        %v323 = vsel %vm321, %v304, 0
        %v326 = vsel %vm321, %v305, 0
        %v329 = vsel %vm321, %v306, 0
        %v332 = vsel %vm321, %v307, 0
        %v335 = vsel %vm321, %v308, 0
        %v338 = vsel %vm321, %v309, 0
        %v341 = vsel %vm321, %v310, 0
        %v344 = vsel %vm321, %v311, 0
        %v347 = vsel %vm321, %v312, 0
        %v350 = vsel %vm321, %v313, 0
        %v353 = vsel %vm321, %v314, 0
        %v356 = vsel %vm321, %v315, 0
        %v359 = vsel %vm321, %v316, 0
        %v362 = vsel %vm321, %v317, 0
        %v365 = vsel %vm321, %v318, 0
        %v368 = vsel %vm321, %v319, 0
        %v371 = vsel %vm321, %v320, 0
        %373 = vmatprep.subr.mxu0 0.0
        %374 = vmatpush1.xpose.msra.mxu0 %v371
        %375 = vmatprep.subr.mxu0 0.0
        %376 = vmatpush1.xpose.msra.mxu0 %v368
        %377 = vmatprep.subr.mxu0 0.0
        %378 = vmatpush1.xpose.msra.mxu0 %v365
        %379 = vmatprep.subr.mxu0 0.0
        %380 = vmatpush1.xpose.msra.mxu0 %v362
        %381 = vmatprep.subr.mxu0 0.0
        %382 = vmatpush1.xpose.msra.mxu0 %v359
        %383 = vmatprep.subr.mxu0 0.0
        %384 = vmatpush1.xpose.msra.mxu0 %v356
        %385 = vmatprep.subr.mxu0 0.0
        %386 = vmatpush1.xpose.msra.mxu0 %v353
        %387 = vmatprep.subr.mxu0 0.0
        %388 = vmatpush1.xpose.msra.mxu0 %v350
        %389 = vmatprep.subr.mxu0 0.0
        %390 = vmatpush1.xpose.msra.mxu0 %v347
        %391 = vmatprep.subr.mxu0 0.0
        %392 = vmatpush1.xpose.msra.mxu0 %v344
        %393 = vmatprep.subr.mxu0 0.0
        %394 = vmatpush1.xpose.msra.mxu0 %v341
        %395 = vmatprep.subr.mxu0 0.0
        %396 = vmatpush1.xpose.msra.mxu0 %v338
        %397 = vmatprep.subr.mxu0 0.0
        %398 = vmatpush1.xpose.msra.mxu0 %v335
        %399 = vmatprep.subr.mxu0 0.0
        %400 = vmatpush1.xpose.msra.mxu0 %v332
        %401 = vmatprep.subr.mxu0 0.0
        %402 = vmatpush1.xpose.msra.mxu0 %v329
        %403 = vmatprep.subr.mxu0 0.0
        %404 = vmatpush1.xpose.msra.mxu0 %v326
        %405 = vmatprep.subr.mxu0 0.0
        %406 = vmatpush2.xpose.msra.mxu0 0.0
        %407 = vmatprep.subr.mxu0 0.0
        %408 = vmatpush2.xpose.msra.mxu0 0.0
        %409 = vmatprep.subr.mxu0 0.0
        %410 = vmatpush2.xpose.msra.mxu0 0.0
        %411 = vmatprep.subr.mxu0 0.0
        %412 = vmatpush2.xpose.msra.mxu0 0.0
        %413 = vmatprep.subr.mxu0 0.0
        %414 = vmatpush2.xpose.msra.mxu0 0.0
        %415 = vmatprep.subr.mxu0 0.0
        %416 = vmatpush2.xpose.msra.mxu0 0.0
        %417 = vmatprep.subr.mxu0 0.0
        %418 = vmatpush2.xpose.msra.mxu0 0.0
        %419 = vmatprep.subr.mxu0 0.0
        %420 = vmatpush2.xpose.msra.mxu0 0.0
        %421 = vmatprep.subr.mxu0 0.0
        %422 = vmatpush2.xpose.msra.mxu0 0.0
        %423 = vmatprep.subr.mxu0 0.0
        %424 = vmatpush2.xpose.msra.mxu0 0.0
        %425 = vmatprep.subr.mxu0 0.0
        %426 = vmatpush2.xpose.msra.mxu0 0.0
        %427 = vmatprep.subr.mxu0 0.0
        %428 = vmatpush2.xpose.msra.mxu0 0.0
        %429 = vmatprep.subr.mxu0 0.0
        %430 = vmatpush2.xpose.msra.mxu0 0.0
        %431 = vmatprep.subr.mxu0 0.0
        %432 = vmatpush2.xpose.msra.mxu0 0.0
        %433 = vmatprep.subr.mxu0 0.0
        %434 = vmatpush2.xpose.msra.mxu0 0.0
        %435 = vmatprep.subr.mxu0 0.0
        %436 = vmatpush2.xpose.msra.mxu0 0.0
        %437 = vmatprep.mubr.f32.mxu0 0.0
        %438 = vmatmul.mubr.f32.gmra.mxu0 %v323
        %v439 = vpop.f32.mrf.mxu0
        %v440 = vadd.f32 0.0, %v439
        %v441 = vpop.f32.mrf.mxu0
        %442 = vdwg.mxu0
        %v443 = vld [vmem:[%s300] sm:$0xff]
        %445 = vset.pattern.permute.xlu0 0
        %446 = vperm.xlu0 %445, %v443
        %v447 = vpop.permute.xlu0 %446
        %v449 = vmul.f32 %v440, %v447
        %v450 = vld [vmem:[%s303] sm:$0x1]
        %v452 = vlaneseq
        %v453 = vshrl.u32 %v452, 7
        %v454 = vsub.s32 0, %v453
        %v455 = vrot.slane %v450, %v454
        %v457 = vmul.f32 %v449, %v455
        %v458 = vmul.f32 %v457, %v457
        %v459 = vsub.f32 1.0, %v458
        %v460 = vmax.f32 %v459, 0.0
        %v461 = vrsqrt.pop %v460
        %v462 = vmul.f32 %v460, %v461
        %vm463 = vcmp.eq.f32.partialorder %v460, inf
        %v464 = vsel %vm463, %v460, %v462
        %vm465 = vcmp.eq.f32.partialorder %v460, 0.0
        %v466 = vand.u32 %v460, 2147483648
        %v467 = vsel %vm465, %v466, %v464
        %v468 = vmul.f32 %v457, 0.87758255
        %v469 = vmul.f32 %v467, 0.47942555
        %v470 = vsub.f32 %v468, %v469
        %vm471 = vcmp.gt.f32.partialorder %v457, -0.87758255
        %v472 = vsub.f32 %v457, 0.23971277
        %v473 = vsel %vm471, %v470, %v472
        %v474 = vlaneseq
        %v475 = vand.u32 %v474, 127
        %s476 = smul.u32 %s24, 128
        %v477 = vstv %s476
        %v478 = vadd.s32 %v475, %v477
        %v479 = vld [vmem:[%s296] sm:$0xff]
        %480 = vset.pattern.permute.xlu0 0
        %481 = vperm.xlu0 %480, %v479
        %v482 = vpop.permute.xlu0 %481
        %vm483 = vcmp.eq.s32.totalorder %v478, %v482
        %v484 = vsel %vm483, %v473, %v457
        %v485 = vmul.f32 %v484, 30.0
        %486 = vst [vmem:[%s282] sm:$0xff] %v485
        %s487 = sand.u32 %s171, 1
        %s488 = scalar_lea.sflag [#allocation3], %s487
        %s489 = sand.u32 %s171, 1
        %s490 = smul.addr %s489, 8
        %s491 = scalar_lea.vmem [#allocation2], %s490
        // Predicated region
        $region41: #{tpu_custom_call.1} parent=39 // pred_check
          %p492 = pneg %p181
        $region42: #{tpu_custom_call.1} parent=39 // pred_check_branch
          %494 = sbr.rel (%p492) target = $region44
        $region43: #{tpu_custom_call.1} parent=39 // pred_region
          %s496 = ssub.s32 128, 128
          %497 = vsyncadd %s488, %s496
          %s498 = smul.addr %s23, 2
          %s499 = sadd.s32 %s24, %s498
          %s500 = smul.addr %s499, 128
          %s501 = scalar_lea.hbm %s5, %s500
          %s503 = sshll.u32 %s491, 4
          %s504 = int_to_ptr.vmem [resolvable:$true] %s503
          %506 = dma.vmem_to_hbm [thread:$0]  %s504, 128, %s501, %s488
        $region44: #{tpu_custom_call.1} parent=39 // pred_fallthru
          _
      $region40: #{tpu_custom_call.1} parent=5 // pred_fallthru
        _
      %p507 = scmp.le.s32.totalorder 2, %s14
      // Predicated region
      $region45: #{tpu_custom_call.1} parent=5 // pred_check
        %p508 = pneg %p507
      $region46: #{tpu_custom_call.1} parent=5 // pred_check_branch
        %510 = sbr.rel (%p508) target = $region48
      $region47: #{tpu_custom_call.1} parent=5 // pred_region
        %s511 = ssub.s32 %s14, 2
        // Predicated region
        $region49: #{tpu_custom_call.1} parent=47 // pred_check
          %p512 = pneg %p187
        $region50: #{tpu_custom_call.1} parent=47 // pred_check_branch
          %514 = sbr.rel (%p512) target = $region52
        $region51: #{tpu_custom_call.1} parent=47 // pred_region
          %s515 = sand.u32 %s172, 1
          %s516 = scalar_lea.sflag [#allocation3], %s515
          %s517 = sand.u32 %s172, 1
          %s518 = smul.addr %s517, 8
          %s519 = scalar_lea.vmem [#allocation2], %s518
          %520 = dma.done %s516, 128
        $region52: #{tpu_custom_call.1} parent=47 // pred_fallthru
          _
      $region48: #{tpu_custom_call.1} parent=5 // pred_fallthru
        _
    $region6: #{tpu_custom_call.1} parent=1 // loop_footer
      %s18 = sadd.s32 1, %s14
    $region7: #{tpu_custom_call.1} parent=1 // loop_footer_branch
      %13 = sbr.rel target = $region3
    $region8: #{tpu_custom_call.1} parent=1 // loop_exit
      _
    %521 = vsyncpa [#allocation3], 1
    %s522 = scalar_lea.sflag [#allocation3], 1
    %523 = vsyncpa %s522, 1

</llo_original>
